<compile_context>
chip_gen: v6e
topology: v6e:2x2x1
jax: 0.10.0
libtpu: 0.0.40
codegen_flags: <defaults>
</compile_context>

<pallas_src>
import numpy as np

import jax
import jax.numpy as jnp
from jax.experimental import pallas as pl
from jax.experimental.pallas import tpu as pltpu

# ---- model configuration (small, consistent with the module) ----
SELF_STATE_DIM = 6
INPUT_DIM = 13
AGENT_STATE_DIM = INPUT_DIM - SELF_STATE_DIM          # 7
WR_DIMS = [64, 32]
WH_DIMS = [64, 32]
X_DIM = 32                                            # == wr_dims[-1] == wh_dims[-1]
GCN2_W1_DIM = 32                                      # conv1 hidden dim (== X_DIM)
FINAL_STATE_DIM = 32
PLANNING_DIMS = [64, 32, 1]
HUMAN_NUM = 5
OTHER_ROBOT_NUM = 3
BATCH = 2
N_ROWS = HUMAN_NUM + OTHER_ROBOT_NUM                  # rows in the raw state tensor (8)
N_AGENTS = N_ROWS + 1                                 # graph nodes (self + humans + others)

# NOTE: the layout below assumes the HUMAN_NUM human rows precede the OTHER_ROBOT_NUM rows
# (as in the original module) and that N_ROWS == 8 (one sublane group per batch element).

# ----------------------------- packed-parameter slab layout -----------------------------
# name: (row_offset, col_offset, rows, cols) inside a single [152, 128] f32 VMEM slab.
PARAM_LAYOUT = {
    # block A: rows 0-7 (misc + all biases)
    "wr_w0":      (0,   0,  SELF_STATE_DIM, WR_DIMS[0]),        # (6, 64)
    "wr_b0":      (6,   0,  1, WR_DIMS[0]),
    "v_b0":       (7,   0,  1, PLANNING_DIMS[0]),
    "b1_table":   (0,  64,  N_ROWS, WH_DIMS[1]),                # per-agent-row 2nd-layer bias
    "wr_b1":      (0,  96,  1, WR_DIMS[1]),
    "c1_rel_b":   (1,  96,  1, GCN2_W1_DIM),
    "c2_rel_b":   (2,  96,  1, FINAL_STATE_DIM),
    "v_b1":       (3,  96,  1, PLANNING_DIMS[1]),
    "v_w2_row":   (4,  96,  1, PLANNING_DIMS[1]),               # v_w2.T (used on the VPU)
    "v_b2":       (5,  96,  1, PLANNING_DIMS[2]),
    # block B: rows 8-15 (fused first-layer agent weights)
    "ag_w0":      (8,   0,  AGENT_STATE_DIM, 2 * WH_DIMS[0]),   # [w_h_w0 | w_o_w0] (7, 128)
    "ag_b0":      (15,  0,  1, 2 * WH_DIMS[0]),                 # [w_h_b0 | w_o_b0]
    # block C: rows 16-23 (precomputed 0/1 human-vs-other lane mask)
    "lane_mask":  (16,  0,  N_ROWS, 2 * WH_DIMS[0]),
    # block D: rows 24-55 (fused second-layer agent weights, stored transposed, lane dense)
    "ag_w1_t":    (24,  0,  WH_DIMS[1], 2 * WH_DIMS[0]),        # ([w_h_w1 ; w_o_w1]).T (32,128)
    # block E: rows 56-87 (lane-packed 32-row matrices)
    "c1_rel_w":   (56,  0,  X_DIM, GCN2_W1_DIM),
    "c1_diff_w":  (56, 32,  X_DIM, GCN2_W1_DIM),                # c1_root_w - c1_rel_w (folded)
    "v_w0":       (56, 64,  FINAL_STATE_DIM, PLANNING_DIMS[0]),
    # block F: rows 88-151 (lane-packed 64-row matrices)
    "wr_w1":      (88,  0,  WR_DIMS[0], WR_DIMS[1]),
    "c2_fused_w": (88, 32,  2 * X_DIM, FINAL_STATE_DIM),        # [[c2_rel_w];[c2_root-rel]]
    "v_w1":       (88, 64,  PLANNING_DIMS[0], PLANNING_DIMS[1]),
}
PARAM_SLAB_ROWS = 152
PARAM_SLAB_COLS = 128


# ------------------------------------- the Pallas kernel -------------------------------------
def value_network_kernel(self_ref, agent_ref, p_ref, out_ref):
    def p(name):
        r0, c0, r, c = PARAM_LAYOUT[name]
        return p_ref[r0:r0 + r, c0:c0 + c]        # static slice of the packed VMEM slab

    def mm(a, b):
        return jnp.dot(a, b, preferred_element_type=jnp.float32)

    B = self_ref.shape[0]
    A2 = 2 * WH_DIMS[0]                           # 128

    # ---- self-agent embedding (w_r MLP: Linear+ReLU, Linear+ReLU) -----------------------
    h = jnp.maximum(mm(self_ref[...], p("wr_w0")) + p("wr_b0"), 0.0)            # [B, 64]
    self_emb = jnp.maximum(mm(h, p("wr_w1")) + p("wr_b1"), 0.0)                 # [B, 32]

    # ---- fused human/other embedding (w_h and w_o share the MXU launch) -----------------
    h = jnp.maximum(mm(agent_ref[...], p("ag_w0")) + p("ag_b0"), 0.0)           # [B*8, 128]
    # zero the 64 lanes belonging to the other MLP (humans use 0:64, others 64:128);
    # the 0/1 mask and the per-row bias table ride the slab DMA (no iota/where in kernel).
    h = (h.reshape(B, N_ROWS, A2) * p("lane_mask")[None, :, :]).reshape(B * N_ROWS, A2)
    emb = jax.lax.dot_general(h, p("ag_w1_t"),
                              dimension_numbers=(((1,), (1,)), ((), ())),
                              preferred_element_type=jnp.float32)               # [B*8, 32]
    agent_emb = jnp.maximum(emb.reshape(B, N_ROWS, WH_DIMS[1])
                            + p("b1_table")[None, :, :], 0.0)                   # [B, 8, 32]

    # ---- GraphConv 1 (complete graph, no self loops), algebraic rewrite -----------------
    #   out_i = (S - x_i)@W_rel + b + x_i@W_root = S@W_rel + b + x_i@(W_root - W_rel)
    S1 = self_emb + jnp.sum(agent_emb, axis=1)                                  # [B, 32]
    s1 = mm(S1, p("c1_rel_w")) + p("c1_rel_b")                                  # [B, 32]
    yd_self = mm(self_emb, p("c1_diff_w"))                                      # [B, 32]
    yd_ag = mm(agent_emb.reshape(B * N_ROWS, X_DIM), p("c1_diff_w"))            # [B*8, 32]
    X1_self = jnp.maximum(yd_self + s1, 0.0)                                    # [B, 32]
    X1_ag = jnp.maximum(yd_ag.reshape(B, N_ROWS, GCN2_W1_DIM)
                        + s1[:, None, :], 0.0)                                  # [B, 8, 32]

    # ---- GraphConv 2, evaluated only at node 0 (the only node the value head reads) -----
    # one fused MXU push: [S2 | X1_node0] @ [[c2_rel_w];[c2_root_w - c2_rel_w]]
    S2 = X1_self + jnp.sum(X1_ag, axis=1)                                       # [B, 32]
    h0 = jnp.maximum(mm(jnp.concatenate([S2, X1_self], axis=-1),
                        p("c2_fused_w")) + p("c2_rel_b"), 0.0)                  # [B, 32]

    # ---- value head ----------------------------------------------------------------------
    v = jnp.maximum(mm(h0, p("v_w0")) + p("v_b0"), 0.0)                         # [B, 64]
    v = jnp.maximum(mm(v, p("v_w1")) + p("v_b1"), 0.0)                          # [B, 32]
    # final [32] -> [1] projection on the VPU (an MXU dot with N=1 is pure waste)
    out_ref[...] = jnp.sum(v * p("v_w2_row"), axis=-1, keepdims=True) + p("v_b2")


# ------------------------------------------ wrapper ------------------------------------------
def _cost_estimate(batch):
    m = batch * N_ROWS
    flops = 2 * (
        batch * SELF_STATE_DIM * WR_DIMS[0]
        + batch * WR_DIMS[0] * WR_DIMS[1]
        + m * AGENT_STATE_DIM * (2 * WH_DIMS[0])
        + m * (2 * WH_DIMS[0]) * WH_DIMS[1]
        + 2 * batch * X_DIM * GCN2_W1_DIM
        + m * X_DIM * GCN2_W1_DIM
        + batch * (2 * X_DIM) * FINAL_STATE_DIM
        + batch * FINAL_STATE_DIM * PLANNING_DIMS[0]
        + batch * PLANNING_DIMS[0] * PLANNING_DIMS[1]
        + batch * PLANNING_DIMS[1]
    )
    bytes_accessed = 4 * (PARAM_SLAB_ROWS * PARAM_SLAB_COLS
                          + batch * SELF_STATE_DIM + m * AGENT_STATE_DIM + batch)
    return pl.CostEstimate(flops=flops, transcendentals=0, bytes_accessed=bytes_accessed)


@jax.jit
def value_network_forward(state, packed_params):
    B = state.shape[0]
    # Input slicing / flattening done in XLA (free); kernel only sees lane-dense 2-D inputs.
    self_state = state[:, 0, :SELF_STATE_DIM]                                   # [B, 6]
    agent_state = state[:, :, SELF_STATE_DIM:].reshape(B * N_ROWS, AGENT_STATE_DIM)  # [B*8, 7]
    vmem = pl.BlockSpec(memory_space=pltpu.MemorySpace.VMEM)
    return pl.pallas_call(
        value_network_kernel,
        out_shape=jax.ShapeDtypeStruct((B, 1), jnp.float32),
        in_specs=[vmem, vmem, vmem],
        out_specs=vmem,
        cost_estimate=_cost_estimate(B),
    )(self_state, agent_state, packed_params)
    # Batching note: keep a single program and grow the flat M (B*8 rows). Only add a grid
    # over batch blocks (>=128-256 rows/block) with dimension_semantics=("parallel",) for
    # very large B, and give the param slab an index_map that always returns (0, 0) so it is
    # DMA'd once and stays VMEM-resident across steps (also how v7x's 2nd TC gets used).


# -------------------------------------- parameter setup --------------------------------------
def init_params(key):
    """Raw per-layer parameters, matching the PyTorch module's Linear layers."""
    keys = jax.random.split(key, 13)

    def linear(k, din, dout, bias=True):
        kw, kb = jax.random.split(k)
        bound = float(din) ** -0.5
        w = jax.random.uniform(kw, (din, dout), jnp.float32, -bound, bound)
        b = jax.random.uniform(kb, (1, dout), jnp.float32, -bound, bound) if bias else None
        return w, b

    raw = {}
    raw["wr_w0"], raw["wr_b0"] = linear(keys[0], SELF_STATE_DIM, WR_DIMS[0])
    raw["wr_w1"], raw["wr_b1"] = linear(keys[1], WR_DIMS[0], WR_DIMS[1])
    raw["wh_w0"], raw["wh_b0"] = linear(keys[2], AGENT_STATE_DIM, WH_DIMS[0])
    raw["wh_w1"], raw["wh_b1"] = linear(keys[3], WH_DIMS[0], WH_DIMS[1])
    raw["wo_w0"], raw["wo_b0"] = linear(keys[4], AGENT_STATE_DIM, WH_DIMS[0])
    raw["wo_w1"], raw["wo_b1"] = linear(keys[5], WH_DIMS[0], WH_DIMS[1])
    raw["c1_rel_w"], raw["c1_rel_b"] = linear(keys[6], X_DIM, GCN2_W1_DIM)
    raw["c1_root_w"], _ = linear(keys[7], X_DIM, GCN2_W1_DIM, bias=False)
    raw["c2_rel_w"], raw["c2_rel_b"] = linear(keys[8], X_DIM, FINAL_STATE_DIM)
    raw["c2_root_w"], _ = linear(keys[9], X_DIM, FINAL_STATE_DIM, bias=False)
    raw["v_w0"], raw["v_b0"] = linear(keys[10], FINAL_STATE_DIM, PLANNING_DIMS[0])
    raw["v_w1"], raw["v_b1"] = linear(keys[11], PLANNING_DIMS[0], PLANNING_DIMS[1])
    raw["v_w2"], raw["v_b2"] = linear(keys[12], PLANNING_DIMS[1], PLANNING_DIMS[2])
    return raw


def pack_params(raw):
    """Fold/fuse and pack all parameters into one [152, 128] f32 slab (host side, once)."""
    r = {k: np.asarray(v, np.float32) for k, v in raw.items()}

    rows = np.arange(N_ROWS)[:, None]
    cols = np.arange(2 * WH_DIMS[0])[None, :]
    lane_mask = ((rows < HUMAN_NUM) == (cols < WH_DIMS[0])).astype(np.float32)

    derived = {
        "wr_w0": r["wr_w0"], "wr_b0": r["wr_b0"],
        "wr_w1": r["wr_w1"], "wr_b1": r["wr_b1"],
        "ag_w0": np.concatenate([r["wh_w0"], r["wo_w0"]], axis=1),
        "ag_b0": np.concatenate([r["wh_b0"], r["wo_b0"]], axis=1),
        "ag_w1_t": np.concatenate([r["wh_w1"], r["wo_w1"]], axis=0).T,
        "b1_table": np.concatenate([np.tile(r["wh_b1"], (HUMAN_NUM, 1)),
                                    np.tile(r["wo_b1"], (OTHER_ROBOT_NUM, 1))], axis=0),
        "lane_mask": lane_mask,
        "c1_rel_w": r["c1_rel_w"],
        "c1_diff_w": r["c1_root_w"] - r["c1_rel_w"],
        "c1_rel_b": r["c1_rel_b"],
        "c2_fused_w": np.concatenate([r["c2_rel_w"],
                                      r["c2_root_w"] - r["c2_rel_w"]], axis=0),
        "c2_rel_b": r["c2_rel_b"],
        "v_w0": r["v_w0"], "v_b0": r["v_b0"],
        "v_w1": r["v_w1"], "v_b1": r["v_b1"],
        "v_w2_row": r["v_w2"].T, "v_b2": r["v_b2"],
    }
    slab = np.zeros((PARAM_SLAB_ROWS, PARAM_SLAB_COLS), np.float32)
    for name, (r0, c0, nr, nc) in PARAM_LAYOUT.items():
        arr = np.asarray(derived[name], np.float32)
        assert arr.shape == (nr, nc), (name, arr.shape, (nr, nc))
        slab[r0:r0 + nr, c0:c0 + nc] = arr
    return jnp.asarray(slab)


# -------------------------- pure-JAX reference (original module math) --------------------------
def reference_forward(state, raw):
    def mlp2(x, w0, b0, w1, b1):
        h = jnp.maximum(x @ w0 + b0, 0.0)
        return jnp.maximum(h @ w1 + b1, 0.0)

    self_state = state[:, 0, :SELF_STATE_DIM]
    human = state[:, :HUMAN_NUM, SELF_STATE_DIM:]
    other = state[:, HUMAN_NUM:, SELF_STATE_DIM:]
    self_emb = mlp2(self_state, raw["wr_w0"], raw["wr_b0"], raw["wr_w1"], raw["wr_b1"])
    hum_emb = mlp2(human, raw["wh_w0"], raw["wh_b0"], raw["wh_w1"], raw["wh_b1"])
    oth_emb = mlp2(other, raw["wo_w0"], raw["wo_b0"], raw["wo_w1"], raw["wo_b1"])
    X = jnp.concatenate([self_emb[:, None, :], hum_emb, oth_emb], axis=1)

    def gconv(x, relw, relb, rootw):
        agg = jnp.sum(x, axis=1, keepdims=True) - x       # complete graph, no self loops
        return agg @ relw + relb + x @ rootw

    h = jnp.maximum(gconv(X, raw["c1_rel_w"], raw["c1_rel_b"], raw["c1_root_w"]), 0.0)
    h = jnp.maximum(gconv(h, raw["c2_rel_w"], raw["c2_rel_b"], raw["c2_root_w"]), 0.0)
    hf = h[:, 0, :]
    v = jnp.maximum(hf @ raw["v_w0"] + raw["v_b0"], 0.0)
    v = jnp.maximum(v @ raw["v_w1"] + raw["v_b1"], 0.0)
    return v @ raw["v_w2"] + raw["v_b2"]


if __name__ == "__main__":
    # state: [batch, human_num + other_robot_num, input_dim]
    state = jax.random.normal(jax.random.PRNGKey(0), (BATCH, N_ROWS, INPUT_DIM),
                              dtype=jnp.float32)
    raw_params = init_params(jax.random.PRNGKey(1234))
    packed = pack_params(raw_params)

    value = value_network_forward(state, packed)
    value = jax.block_until_ready(value)
    assert value.shape == (BATCH, 1) and value.dtype == jnp.float32

    ref = reference_forward(state, raw_params)
    np.testing.assert_allclose(np.asarray(value), np.asarray(ref), rtol=1e-4, atol=1e-4)
    print("KERNEL_OK")
</pallas_src>

<mosaic_0001>
module attributes {stable_mosaic.version = 11 : i64} {
  func.func @value_network_kernel(%arg0: memref<2x6xf32, #tpu.memory_space<vmem>>, %arg1: memref<16x7xf32, #tpu.memory_space<vmem>>, %arg2: memref<152x128xf32, #tpu.memory_space<vmem>>, %arg3: memref<2x1xf32, #tpu.memory_space<vmem>>) attributes {dimension_semantics = [], scalar_prefetch = 0 : i64, scratch_operands = 0 : i64, tpu.core_type = #tpu.core_type<tc>} {
    %c0 = arith.constant 0 : index
    %c0_0 = arith.constant 0 : index
    %0 = vector.load %arg0[%c0, %c0_0] : memref<2x6xf32, #tpu.memory_space<vmem>>, vector<2x6xf32>
    %c0_1 = arith.constant 0 : index
    %c0_2 = arith.constant 0 : index
    %1 = vector.load %arg2[%c0_1, %c0_2] : memref<152x128xf32, #tpu.memory_space<vmem>>, vector<6x64xf32>
    %cst = arith.constant dense<0.000000e+00> : vector<2x64xf32>
    %2 = tpu.matmul %0, %1, %cst {dimension_numbers = #tpu.dot_dimension_numbers<[1], [0], [0], [1], [0, 0, 1, 1], [], []>} : vector<2x6xf32>, vector<6x64xf32>, vector<2x64xf32> -> vector<2x64xf32>
    %c6 = arith.constant 6 : index
    %c0_3 = arith.constant 0 : index
    %3 = vector.load %arg2[%c6, %c0_3] : memref<152x128xf32, #tpu.memory_space<vmem>>, vector<1x64xf32>
    %4 = vector.broadcast %3 : vector<1x64xf32> to vector<2x64xf32>
    %5 = arith.addf %2, %4 : vector<2x64xf32>
    %cst_4 = arith.constant 0.000000e+00 : f32
    %6 = vector.broadcast %cst_4 : f32 to vector<2x64xf32>
    %7 = arith.maximumf %5, %6 : vector<2x64xf32>
    %c88 = arith.constant 88 : index
    %c0_5 = arith.constant 0 : index
    %8 = vector.load %arg2[%c88, %c0_5] : memref<152x128xf32, #tpu.memory_space<vmem>>, vector<64x32xf32>
    %cst_6 = arith.constant dense<0.000000e+00> : vector<2x32xf32>
    %9 = tpu.matmul %7, %8, %cst_6 {dimension_numbers = #tpu.dot_dimension_numbers<[1], [0], [0], [1], [0, 0, 1, 1], [], []>} : vector<2x64xf32>, vector<64x32xf32>, vector<2x32xf32> -> vector<2x32xf32>
    %c0_7 = arith.constant 0 : index
    %c96 = arith.constant 96 : index
    %10 = vector.load %arg2[%c0_7, %c96] : memref<152x128xf32, #tpu.memory_space<vmem>>, vector<1x32xf32>
    %11 = vector.broadcast %10 : vector<1x32xf32> to vector<2x32xf32>
    %12 = arith.addf %9, %11 : vector<2x32xf32>
    %cst_8 = arith.constant 0.000000e+00 : f32
    %13 = vector.broadcast %cst_8 : f32 to vector<2x32xf32>
    %14 = arith.maximumf %12, %13 : vector<2x32xf32>
    %c0_9 = arith.constant 0 : index
    %c0_10 = arith.constant 0 : index
    %15 = vector.load %arg1[%c0_9, %c0_10] : memref<16x7xf32, #tpu.memory_space<vmem>>, vector<16x7xf32>
    %c8 = arith.constant 8 : index
    %c0_11 = arith.constant 0 : index
    %16 = vector.load %arg2[%c8, %c0_11] : memref<152x128xf32, #tpu.memory_space<vmem>>, vector<7x128xf32>
    %cst_12 = arith.constant dense<0.000000e+00> : vector<16x128xf32>
    %17 = tpu.matmul %15, %16, %cst_12 {dimension_numbers = #tpu.dot_dimension_numbers<[1], [0], [0], [1], [0, 0, 1, 1], [], []>} : vector<16x7xf32>, vector<7x128xf32>, vector<16x128xf32> -> vector<16x128xf32>
    %c15 = arith.constant 15 : index
    %c0_13 = arith.constant 0 : index
    %18 = vector.load %arg2[%c15, %c0_13] : memref<152x128xf32, #tpu.memory_space<vmem>>, vector<1x128xf32>
    %19 = vector.broadcast %18 : vector<1x128xf32> to vector<16x128xf32>
    %20 = arith.addf %17, %19 : vector<16x128xf32>
    %cst_14 = arith.constant 0.000000e+00 : f32
    %21 = vector.broadcast %cst_14 : f32 to vector<16x128xf32>
    %22 = arith.maximumf %20, %21 : vector<16x128xf32>
    %23 = vector.shape_cast %22 : vector<16x128xf32> to vector<2x8x128xf32>
    %c16 = arith.constant 16 : index
    %c0_15 = arith.constant 0 : index
    %24 = vector.load %arg2[%c16, %c0_15] : memref<152x128xf32, #tpu.memory_space<vmem>>, vector<8x128xf32>
    %25 = vector.shape_cast %24 : vector<8x128xf32> to vector<1x8x128xf32>
    %26 = vector.broadcast %25 : vector<1x8x128xf32> to vector<2x8x128xf32>
    %27 = arith.mulf %23, %26 : vector<2x8x128xf32>
    %28 = vector.shape_cast %27 : vector<2x8x128xf32> to vector<16x128xf32>
    %c24 = arith.constant 24 : index
    %c0_16 = arith.constant 0 : index
    %29 = vector.load %arg2[%c24, %c0_16] : memref<152x128xf32, #tpu.memory_space<vmem>>, vector<32x128xf32>
    %cst_17 = arith.constant dense<0.000000e+00> : vector<16x32xf32>
    %30 = tpu.matmul %28, %29, %cst_17 {dimension_numbers = #tpu.dot_dimension_numbers<[1], [1], [0], [0], [0, 0, 1, 0], [], []>} : vector<16x128xf32>, vector<32x128xf32>, vector<16x32xf32> -> vector<16x32xf32>
    %31 = vector.shape_cast %30 : vector<16x32xf32> to vector<2x8x32xf32>
    %c0_18 = arith.constant 0 : index
    %c64 = arith.constant 64 : index
    %32 = vector.load %arg2[%c0_18, %c64] : memref<152x128xf32, #tpu.memory_space<vmem>>, vector<8x32xf32>
    %33 = vector.shape_cast %32 : vector<8x32xf32> to vector<1x8x32xf32>
    %34 = vector.broadcast %33 : vector<1x8x32xf32> to vector<2x8x32xf32>
    %35 = arith.addf %31, %34 : vector<2x8x32xf32>
    %cst_19 = arith.constant 0.000000e+00 : f32
    %36 = vector.broadcast %cst_19 : f32 to vector<2x8x32xf32>
    %37 = arith.maximumf %35, %36 : vector<2x8x32xf32>
    %cst_20 = arith.constant dense<0.000000e+00> : vector<2x32xf32>
    %38 = vector.multi_reduction <add>, %37, %cst_20 [1] : vector<2x8x32xf32> to vector<2x32xf32>
    %39 = arith.addf %14, %38 : vector<2x32xf32>
    %c56 = arith.constant 56 : index
    %c0_21 = arith.constant 0 : index
    %40 = vector.load %arg2[%c56, %c0_21] : memref<152x128xf32, #tpu.memory_space<vmem>>, vector<32x32xf32>
    %cst_22 = arith.constant dense<0.000000e+00> : vector<2x32xf32>
    %41 = tpu.matmul %39, %40, %cst_22 {dimension_numbers = #tpu.dot_dimension_numbers<[1], [0], [0], [1], [0, 0, 1, 1], [], []>} : vector<2x32xf32>, vector<32x32xf32>, vector<2x32xf32> -> vector<2x32xf32>
    %c1 = arith.constant 1 : index
    %c96_23 = arith.constant 96 : index
    %42 = vector.load %arg2[%c1, %c96_23] : memref<152x128xf32, #tpu.memory_space<vmem>>, vector<1x32xf32>
    %43 = vector.broadcast %42 : vector<1x32xf32> to vector<2x32xf32>
    %44 = arith.addf %41, %43 : vector<2x32xf32>
    %c56_24 = arith.constant 56 : index
    %c32 = arith.constant 32 : index
    %45 = vector.load %arg2[%c56_24, %c32] : memref<152x128xf32, #tpu.memory_space<vmem>>, vector<32x32xf32>
    %cst_25 = arith.constant dense<0.000000e+00> : vector<2x32xf32>
    %46 = tpu.matmul %14, %45, %cst_25 {dimension_numbers = #tpu.dot_dimension_numbers<[1], [0], [0], [1], [0, 0, 1, 1], [], []>} : vector<2x32xf32>, vector<32x32xf32>, vector<2x32xf32> -> vector<2x32xf32>
    %47 = vector.shape_cast %37 : vector<2x8x32xf32> to vector<16x32xf32>
    %c56_26 = arith.constant 56 : index
    %c32_27 = arith.constant 32 : index
    %48 = vector.load %arg2[%c56_26, %c32_27] : memref<152x128xf32, #tpu.memory_space<vmem>>, vector<32x32xf32>
    %cst_28 = arith.constant dense<0.000000e+00> : vector<16x32xf32>
    %49 = tpu.matmul %47, %48, %cst_28 {dimension_numbers = #tpu.dot_dimension_numbers<[1], [0], [0], [1], [0, 0, 1, 1], [], []>} : vector<16x32xf32>, vector<32x32xf32>, vector<16x32xf32> -> vector<16x32xf32>
    %50 = arith.addf %46, %44 : vector<2x32xf32>
    %cst_29 = arith.constant 0.000000e+00 : f32
    %51 = vector.broadcast %cst_29 : f32 to vector<2x32xf32>
    %52 = arith.maximumf %50, %51 : vector<2x32xf32>
    %53 = vector.shape_cast %49 : vector<16x32xf32> to vector<2x8x32xf32>
    %54 = vector.shape_cast %44 : vector<2x32xf32> to vector<2x1x32xf32>
    %55 = vector.broadcast %54 : vector<2x1x32xf32> to vector<2x8x32xf32>
    %56 = arith.addf %53, %55 : vector<2x8x32xf32>
    %cst_30 = arith.constant 0.000000e+00 : f32
    %57 = vector.broadcast %cst_30 : f32 to vector<2x8x32xf32>
    %58 = arith.maximumf %56, %57 : vector<2x8x32xf32>
    %cst_31 = arith.constant dense<0.000000e+00> : vector<2x32xf32>
    %59 = vector.multi_reduction <add>, %58, %cst_31 [1] : vector<2x8x32xf32> to vector<2x32xf32>
    %60 = arith.addf %52, %59 : vector<2x32xf32>
    %61 = tpu.concatenate %60, %52 in 1 : vector<2x32xf32>, vector<2x32xf32> -> vector<2x64xf32>
    %c88_32 = arith.constant 88 : index
    %c32_33 = arith.constant 32 : index
    %62 = vector.load %arg2[%c88_32, %c32_33] : memref<152x128xf32, #tpu.memory_space<vmem>>, vector<64x32xf32>
    %cst_34 = arith.constant dense<0.000000e+00> : vector<2x32xf32>
    %63 = tpu.matmul %61, %62, %cst_34 {dimension_numbers = #tpu.dot_dimension_numbers<[1], [0], [0], [1], [0, 0, 1, 1], [], []>} : vector<2x64xf32>, vector<64x32xf32>, vector<2x32xf32> -> vector<2x32xf32>
    %c2 = arith.constant 2 : index
    %c96_35 = arith.constant 96 : index
    %64 = vector.load %arg2[%c2, %c96_35] : memref<152x128xf32, #tpu.memory_space<vmem>>, vector<1x32xf32>
    %65 = vector.broadcast %64 : vector<1x32xf32> to vector<2x32xf32>
    %66 = arith.addf %63, %65 : vector<2x32xf32>
    %cst_36 = arith.constant 0.000000e+00 : f32
    %67 = vector.broadcast %cst_36 : f32 to vector<2x32xf32>
    %68 = arith.maximumf %66, %67 : vector<2x32xf32>
    %c56_37 = arith.constant 56 : index
    %c64_38 = arith.constant 64 : index
    %69 = vector.load %arg2[%c56_37, %c64_38] : memref<152x128xf32, #tpu.memory_space<vmem>>, vector<32x64xf32>
    %cst_39 = arith.constant dense<0.000000e+00> : vector<2x64xf32>
    %70 = tpu.matmul %68, %69, %cst_39 {dimension_numbers = #tpu.dot_dimension_numbers<[1], [0], [0], [1], [0, 0, 1, 1], [], []>} : vector<2x32xf32>, vector<32x64xf32>, vector<2x64xf32> -> vector<2x64xf32>
    %c7 = arith.constant 7 : index
    %c0_40 = arith.constant 0 : index
    %71 = vector.load %arg2[%c7, %c0_40] : memref<152x128xf32, #tpu.memory_space<vmem>>, vector<1x64xf32>
    %72 = vector.broadcast %71 : vector<1x64xf32> to vector<2x64xf32>
    %73 = arith.addf %70, %72 : vector<2x64xf32>
    %cst_41 = arith.constant 0.000000e+00 : f32
    %74 = vector.broadcast %cst_41 : f32 to vector<2x64xf32>
    %75 = arith.maximumf %73, %74 : vector<2x64xf32>
    %c88_42 = arith.constant 88 : index
    %c64_43 = arith.constant 64 : index
    %76 = vector.load %arg2[%c88_42, %c64_43] : memref<152x128xf32, #tpu.memory_space<vmem>>, vector<64x32xf32>
    %cst_44 = arith.constant dense<0.000000e+00> : vector<2x32xf32>
    %77 = tpu.matmul %75, %76, %cst_44 {dimension_numbers = #tpu.dot_dimension_numbers<[1], [0], [0], [1], [0, 0, 1, 1], [], []>} : vector<2x64xf32>, vector<64x32xf32>, vector<2x32xf32> -> vector<2x32xf32>
    %c3 = arith.constant 3 : index
    %c96_45 = arith.constant 96 : index
    %78 = vector.load %arg2[%c3, %c96_45] : memref<152x128xf32, #tpu.memory_space<vmem>>, vector<1x32xf32>
    %79 = vector.broadcast %78 : vector<1x32xf32> to vector<2x32xf32>
    %80 = arith.addf %77, %79 : vector<2x32xf32>
    %cst_46 = arith.constant 0.000000e+00 : f32
    %81 = vector.broadcast %cst_46 : f32 to vector<2x32xf32>
    %82 = arith.maximumf %80, %81 : vector<2x32xf32>
    %c4 = arith.constant 4 : index
    %c96_47 = arith.constant 96 : index
    %83 = vector.load %arg2[%c4, %c96_47] : memref<152x128xf32, #tpu.memory_space<vmem>>, vector<1x32xf32>
    %84 = vector.broadcast %83 : vector<1x32xf32> to vector<2x32xf32>
    %85 = arith.mulf %82, %84 : vector<2x32xf32>
    %cst_48 = arith.constant dense<0.000000e+00> : vector<2xf32>
    %86 = vector.multi_reduction <add>, %85, %cst_48 [1] : vector<2x32xf32> to vector<2xf32>
    %87 = vector.shape_cast %86 : vector<2xf32> to vector<2x1xf32>
    %c5 = arith.constant 5 : index
    %c96_49 = arith.constant 96 : index
    %88 = vector.load %arg2[%c5, %c96_49] : memref<152x128xf32, #tpu.memory_space<vmem>>, vector<1x1xf32>
    %89 = vector.broadcast %88 : vector<1x1xf32> to vector<2x1xf32>
    %90 = arith.addf %87, %89 : vector<2x1xf32>
    %c0_50 = arith.constant 0 : index
    %c0_51 = arith.constant 0 : index
    %91 = vector.load %arg3[%c0_50, %c0_51] : memref<2x1xf32, #tpu.memory_space<vmem>>, vector<2x1xf32>
    tpu.vector_store %arg3[%c0_50, %c0_51], %90 {strides = array<i32>} : memref<2x1xf32, #tpu.memory_space<vmem>>, vector<2x1xf32>,
    return
  }
}

</mosaic_0001>

<llo_original>
// kernel: value_network_forward.1
$region0: #{value_network_forward.1}
  #allocation0 [shape = 'u32[]', space=smem, size = 0x4, offset = 0x4, fixed_abs, tag = 'smem constant byte address 0x4 - core index']
  #allocation1 [shape = 'u32[144,128]{1,0:T(1,128)}', space=vmem, size = 0x12000, scoped, tag = 'internal scratch']
  %s0 = inlined_call_operand.vmem [shape: f32[2,6], index: 0, kind: input, shape index: {}]
  %s1 = inlined_call_operand.vmem [shape: f32[16,7], index: 1, kind: input, shape index: {}]
  %s2 = inlined_call_operand.hbm [shape: f32[152,128], index: 2, kind: input, shape index: {}]
  %s3 = inlined_call_operand.vmem [shape: f32[2,1], index: 3, kind: output, shape index: {}]
  %s4 = sld [smem:[#allocation0]]
  $region26: #{value_network_forward.1} parent=0
    _
  %s6 = ssub.s32 1, %s4
  %s7 = scalar_select 0, %s6, %s4
  $region1: #{value_network_forward.1} parent=0
    #allocation2 [shape = 'u8[77824]{0}', space=vmem, size = 0x13000, scoped, tag = 'input window, operand 2, single buffered']
    #allocation3 [shape = 's32[1]{0}', space=sflag, size = 0x4, scoped, tag = 'scoped memory for value_network_forward.1']
    %8 = vsyncpa [#allocation3], 0
    // Predicated region
    $region2: #{value_network_forward.1} parent=1 // pred_check
      _
    $region3: #{value_network_forward.1} parent=1 // pred_check_branch
      %10 = sbr.rel (0) target = $region5
    $region4: #{value_network_forward.1} parent=1 // pred_region
      _
    $region5: #{value_network_forward.1} parent=1 // pred_fallthru
      _
    // Predicated region
    $region6: #{value_network_forward.1} parent=1 // pred_check
      _
    $region7: #{value_network_forward.1} parent=1 // pred_check_branch
      %12 = sbr.rel (0) target = $region9
    $region8: #{value_network_forward.1} parent=1 // pred_region
      _
    $region9: #{value_network_forward.1} parent=1 // pred_fallthru
      _
    // Predicated region
    $region10: #{value_network_forward.1} parent=1 // pred_check
      _
    $region11: #{value_network_forward.1} parent=1 // pred_check_branch
      %14 = sbr.rel (0) target = $region13
    $region12: #{value_network_forward.1} parent=1 // pred_region
      %s16 = ssub.s32 2432, 2432
      %17 = vsyncadd [#allocation3], %s16
      %s18 = sshll.u32 [#allocation2], 4
      %s19 = int_to_ptr.vmem [resolvable:$true] %s18
      %24 = dma.hbm_to_vmem [thread:$0]  %s2, 2432, %s19, [#allocation3], 128, 128, 8
    $region13: #{value_network_forward.1} parent=1 // pred_fallthru
      _
    // Predicated region
    $region14: #{value_network_forward.1} parent=1 // pred_check
      _
    $region15: #{value_network_forward.1} parent=1 // pred_check_branch
      %26 = sbr.rel (0) target = $region17
    $region16: #{value_network_forward.1} parent=1 // pred_region
      %27 = dma.done [#allocation3], 2432
    $region17: #{value_network_forward.1} parent=1 // pred_fallthru
      _
    %v28 = vld [vmem:[%s0] sm:$0x3]
    %v29 = vld [vmem:[#allocation2] sm:$0x3f]
    %v30 = vld [vmem:[#allocation2 + $0x6] sm:$0x1]
    %v31 = vlaneseq
    %v32 = vshrl.u32 %v31, 7
    %v33 = vsub.s32 0, %v32
    %v34 = vrot.slane %v30, %v33
    %vm35 = vcmask 48128
    %v37 = vsel %vm35, %v28, 0
    %vm39 = vcmask 1045504
    %v41 = vsel %vm39, %v29, 0
    %43 = vmatprep.subr.mxu0 0.0
    %44 = vmatpush1.msra.mxu0 0.0
    %45 = vmatprep.subr.mxu0 0.0
    %46 = vmatpush1.msra.mxu0 0.0
    %47 = vmatprep.subr.mxu0 0.0
    %48 = vmatpush1.msra.mxu0 0.0
    %49 = vmatprep.subr.mxu0 0.0
    %50 = vmatpush1.msra.mxu0 0.0
    %51 = vmatprep.subr.mxu0 0.0
    %52 = vmatpush1.msra.mxu0 0.0
    %53 = vmatprep.subr.mxu0 0.0
    %54 = vmatpush1.msra.mxu0 0.0
    %55 = vmatprep.subr.mxu0 0.0
    %56 = vmatpush1.msra.mxu0 0.0
    %57 = vmatprep.subr.mxu0 0.0
    %58 = vmatpush1.msra.mxu0 0.0
    %59 = vmatprep.subr.mxu0 0.0
    %60 = vmatpush1.msra.mxu0 0.0
    %61 = vmatprep.subr.mxu0 0.0
    %62 = vmatpush1.msra.mxu0 0.0
    %63 = vmatprep.subr.mxu0 0.0
    %64 = vmatpush1.msra.mxu0 0.0
    %65 = vmatprep.subr.mxu0 0.0
    %66 = vmatpush1.msra.mxu0 0.0
    %67 = vmatprep.subr.mxu0 0.0
    %68 = vmatpush1.msra.mxu0 0.0
    %69 = vmatprep.subr.mxu0 0.0
    %70 = vmatpush1.msra.mxu0 0.0
    %71 = vmatprep.subr.mxu0 0.0
    %72 = vmatpush1.msra.mxu0 0.0
    %73 = vmatprep.subr.mxu0 0.0
    %74 = vmatpush1.msra.mxu0 %v41
    %75 = vmatprep.subr.mxu0 0.0
    %76 = vmatpush2.msra.mxu0 0.0
    %77 = vmatprep.subr.mxu0 0.0
    %78 = vmatpush2.msra.mxu0 0.0
    %79 = vmatprep.subr.mxu0 0.0
    %80 = vmatpush2.msra.mxu0 0.0
    %81 = vmatprep.subr.mxu0 0.0
    %82 = vmatpush2.msra.mxu0 0.0
    %83 = vmatprep.subr.mxu0 0.0
    %84 = vmatpush2.msra.mxu0 0.0
    %85 = vmatprep.subr.mxu0 0.0
    %86 = vmatpush2.msra.mxu0 0.0
    %87 = vmatprep.subr.mxu0 0.0
    %88 = vmatpush2.msra.mxu0 0.0
    %89 = vmatprep.subr.mxu0 0.0
    %90 = vmatpush2.msra.mxu0 0.0
    %91 = vmatprep.subr.mxu0 0.0
    %92 = vmatpush2.msra.mxu0 0.0
    %93 = vmatprep.subr.mxu0 0.0
    %94 = vmatpush2.msra.mxu0 0.0
    %95 = vmatprep.subr.mxu0 0.0
    %96 = vmatpush2.msra.mxu0 0.0
    %97 = vmatprep.subr.mxu0 0.0
    %98 = vmatpush2.msra.mxu0 0.0
    %99 = vmatprep.subr.mxu0 0.0
    %100 = vmatpush2.msra.mxu0 0.0
    %101 = vmatprep.subr.mxu0 0.0
    %102 = vmatpush2.msra.mxu0 0.0
    %103 = vmatprep.subr.mxu0 0.0
    %104 = vmatpush2.msra.mxu0 0.0
    %105 = vmatprep.subr.mxu0 0.0
    %106 = vmatpush2.msra.mxu0 0.0
    %107 = vmatprep.mubr.f32.mxu0 0.0
    %108 = vmatmul.mubr.f32.gmra.mxu0 %v37
    %v109 = vpop.f32.mrf.mxu0
    %v110 = vadd.f32 %v34, %v109
    %v111 = vpop.f32.mrf.mxu0
    %112 = vdwg.mxu0
    %v113 = vmax.f32 %v110, 0.0
    %v114 = vld [vmem:[#allocation2 + $0x58] sm:$0xff]
    %v115 = vld [vmem:[#allocation2 + $0x60] sm:$0xff]
    %v116 = vld [vmem:[#allocation2 + $0x68] sm:$0xff]
    %v117 = vld [vmem:[#allocation2 + $0x70] sm:$0xff]
    %v118 = vld [vmem:[#allocation2 + $0x78] sm:$0xff]
    %v119 = vld [vmem:[#allocation2 + $0x80] sm:$0xff]
    %v120 = vld [vmem:[#allocation2 + $0x88] sm:$0xff]
    %v121 = vld [vmem:[#allocation2 + $0x90] sm:$0xff]
    %v122 = vld [vmem:[#allocation2] sm:$0x1]
    %v123 = vlaneseq
    %v124 = vshrl.u32 %v123, 7
    %v125 = vsub.s32 0, %v124
    %v126 = vrot.slane %v122, %v125
    %128 = vrot.lane.b32.xlu0 %v126, 32
    %v129 = vpop.permute.xlu0 %128
    %vm131 = vcmask 523264
    %v133 = vsel %vm131, %v113, 0
    %135 = vmatprep.subr.mxu0 0.0
    %136 = vmatpush1.msra.mxu0 0.0
    %137 = vmatprep.subr.mxu0 0.0
    %138 = vmatpush1.msra.mxu0 0.0
    %139 = vmatprep.subr.mxu0 0.0
    %140 = vmatpush1.msra.mxu0 0.0
    %141 = vmatprep.subr.mxu0 0.0
    %142 = vmatpush1.msra.mxu0 0.0
    %143 = vmatprep.subr.mxu0 0.0
    %144 = vmatpush1.msra.mxu0 0.0
    %145 = vmatprep.subr.mxu0 0.0
    %146 = vmatpush1.msra.mxu0 0.0
    %147 = vmatprep.subr.mxu0 0.0
    %148 = vmatpush1.msra.mxu0 0.0
    %149 = vmatprep.subr.mxu0 0.0
    %150 = vmatpush1.msra.mxu0 0.0
    %151 = vmatprep.subr.mxu0 0.0
    %152 = vmatpush1.msra.mxu0 %v121
    %153 = vmatprep.subr.mxu0 0.0
    %154 = vmatpush1.msra.mxu0 %v120
    %155 = vmatprep.subr.mxu0 0.0
    %156 = vmatpush1.msra.mxu0 %v119
    %157 = vmatprep.subr.mxu0 0.0
    %158 = vmatpush1.msra.mxu0 %v118
    %159 = vmatprep.subr.mxu0 0.0
    %160 = vmatpush1.msra.mxu0 %v117
    %161 = vmatprep.subr.mxu0 0.0
    %162 = vmatpush1.msra.mxu0 %v116
    %163 = vmatprep.subr.mxu0 0.0
    %164 = vmatpush1.msra.mxu0 %v115
    %165 = vmatprep.subr.mxu0 0.0
    %166 = vmatpush1.msra.mxu0 %v114
    %167 = vmatprep.subr.mxu0 0.0
    %168 = vmatpush2.msra.mxu0 0.0
    %169 = vmatprep.subr.mxu0 0.0
    %170 = vmatpush2.msra.mxu0 0.0
    %171 = vmatprep.subr.mxu0 0.0
    %172 = vmatpush2.msra.mxu0 0.0
    %173 = vmatprep.subr.mxu0 0.0
    %174 = vmatpush2.msra.mxu0 0.0
    %175 = vmatprep.subr.mxu0 0.0
    %176 = vmatpush2.msra.mxu0 0.0
    %177 = vmatprep.subr.mxu0 0.0
    %178 = vmatpush2.msra.mxu0 0.0
    %179 = vmatprep.subr.mxu0 0.0
    %180 = vmatpush2.msra.mxu0 0.0
    %181 = vmatprep.subr.mxu0 0.0
    %182 = vmatpush2.msra.mxu0 0.0
    %183 = vmatprep.subr.mxu0 0.0
    %184 = vmatpush2.msra.mxu0 0.0
    %185 = vmatprep.subr.mxu0 0.0
    %186 = vmatpush2.msra.mxu0 0.0
    %187 = vmatprep.subr.mxu0 0.0
    %188 = vmatpush2.msra.mxu0 0.0
    %189 = vmatprep.subr.mxu0 0.0
    %190 = vmatpush2.msra.mxu0 0.0
    %191 = vmatprep.subr.mxu0 0.0
    %192 = vmatpush2.msra.mxu0 0.0
    %193 = vmatprep.subr.mxu0 0.0
    %194 = vmatpush2.msra.mxu0 0.0
    %195 = vmatprep.subr.mxu0 0.0
    %196 = vmatpush2.msra.mxu0 0.0
    %197 = vmatprep.subr.mxu0 0.0
    %198 = vmatpush2.msra.mxu0 0.0
    %199 = vmatprep.mubr.f32.mxu0 0.0
    %200 = vmatmul.mubr.f32.gmra.mxu0 %v133
    %v201 = vpop.f32.mrf.mxu0
    %v202 = vadd.f32 %v129, %v201
    %v203 = vpop.f32.mrf.mxu0
    %204 = vdwg.mxu0
    %v205 = vmax.f32 %v202, 0.0
    %v206 = vld [vmem:[%s1] sm:$0xff]
    %v207 = vld [vmem:[%s1 + $0x8] sm:$0xff]
    %v208 = vld [vmem:[#allocation2 + $0x8] sm:$0x7f]
    %v209 = vld [vmem:[#allocation2 + $0xf] sm:$0x1]
    %v210 = vlaneseq
    %v211 = vshrl.u32 %v210, 7
    %v212 = vsub.s32 0, %v211
    %v213 = vrot.slane %v209, %v212
    %vm214 = vcmask 56320
    %v216 = vsel %vm214, %v206, 0
    %v219 = vsel %vm214, %v207, 0
    %vm221 = vcmask 1046528
    %v223 = vsel %vm221, %v208, 0
    %225 = vmatprep.subr.mxu0 0.0
    %226 = vmatpush1.msra.mxu0 0.0
    %227 = vmatprep.subr.mxu0 0.0
    %228 = vmatpush1.msra.mxu0 0.0
    %229 = vmatprep.subr.mxu0 0.0
    %230 = vmatpush1.msra.mxu0 0.0
    %231 = vmatprep.subr.mxu0 0.0
    %232 = vmatpush1.msra.mxu0 0.0
    %233 = vmatprep.subr.mxu0 0.0
    %234 = vmatpush1.msra.mxu0 0.0
    %235 = vmatprep.subr.mxu0 0.0
    %236 = vmatpush1.msra.mxu0 0.0
    %237 = vmatprep.subr.mxu0 0.0
    %238 = vmatpush1.msra.mxu0 0.0
    %239 = vmatprep.subr.mxu0 0.0
    %240 = vmatpush1.msra.mxu0 0.0
    %241 = vmatprep.subr.mxu0 0.0
    %242 = vmatpush1.msra.mxu0 0.0
    %243 = vmatprep.subr.mxu0 0.0
    %244 = vmatpush1.msra.mxu0 0.0
    %245 = vmatprep.subr.mxu0 0.0
    %246 = vmatpush1.msra.mxu0 0.0
    %247 = vmatprep.subr.mxu0 0.0
    %248 = vmatpush1.msra.mxu0 0.0
    %249 = vmatprep.subr.mxu0 0.0
    %250 = vmatpush1.msra.mxu0 0.0
    %251 = vmatprep.subr.mxu0 0.0
    %252 = vmatpush1.msra.mxu0 0.0
    %253 = vmatprep.subr.mxu0 0.0
    %254 = vmatpush1.msra.mxu0 0.0
    %255 = vmatprep.subr.mxu0 0.0
    %256 = vmatpush1.msra.mxu0 %v223
    %257 = vmatprep.subr.mxu0 0.0
    %258 = vmatpush2.msra.mxu0 0.0
    %259 = vmatprep.subr.mxu0 0.0
    %260 = vmatpush2.msra.mxu0 0.0
    %261 = vmatprep.subr.mxu0 0.0
    %262 = vmatpush2.msra.mxu0 0.0
    %263 = vmatprep.subr.mxu0 0.0
    %264 = vmatpush2.msra.mxu0 0.0
    %265 = vmatprep.subr.mxu0 0.0
    %266 = vmatpush2.msra.mxu0 0.0
    %267 = vmatprep.subr.mxu0 0.0
    %268 = vmatpush2.msra.mxu0 0.0
    %269 = vmatprep.subr.mxu0 0.0
    %270 = vmatpush2.msra.mxu0 0.0
    %271 = vmatprep.subr.mxu0 0.0
    %272 = vmatpush2.msra.mxu0 0.0
    %273 = vmatprep.subr.mxu0 0.0
    %274 = vmatpush2.msra.mxu0 0.0
    %275 = vmatprep.subr.mxu0 0.0
    %276 = vmatpush2.msra.mxu0 0.0
    %277 = vmatprep.subr.mxu0 0.0
    %278 = vmatpush2.msra.mxu0 0.0
    %279 = vmatprep.subr.mxu0 0.0
    %280 = vmatpush2.msra.mxu0 0.0
    %281 = vmatprep.subr.mxu0 0.0
    %282 = vmatpush2.msra.mxu0 0.0
    %283 = vmatprep.subr.mxu0 0.0
    %284 = vmatpush2.msra.mxu0 0.0
    %285 = vmatprep.subr.mxu0 0.0
    %286 = vmatpush2.msra.mxu0 0.0
    %287 = vmatprep.subr.mxu0 0.0
    %288 = vmatpush2.msra.mxu0 0.0
    %289 = vmatprep.mubr.f32.mxu0 0.0
    %290 = vmatmul.mubr.f32.gmra.mxu0 %v216
    %v291 = vpop.f32.mrf.mxu0
    %v292 = vadd.f32 %v213, %v291
    %v293 = vpop.f32.mrf.mxu0
    %294 = vmatprep.mubr.f32.mxu0 0.0
    %295 = vmatmul.mubr.f32.gmra.mxu0 %v219
    %v296 = vpop.f32.mrf.mxu0
    %v297 = vadd.f32 %v213, %v296
    %v298 = vpop.f32.mrf.mxu0
    %299 = vdwg.mxu0
    %v300 = vmax.f32 %v292, 0.0
    %v301 = vmax.f32 %v297, 0.0
    %v302 = vld [vmem:[#allocation2 + $0x10] sm:$0xff]
    %v303 = vmul.f32 %v300, %v302
    %v304 = vmul.f32 %v301, %v302
    %v305 = vld [vmem:[#allocation2 + $0x18] sm:$0xff]
    %v306 = vld [vmem:[#allocation2 + $0x20] sm:$0xff]
    %v307 = vld [vmem:[#allocation2 + $0x28] sm:$0xff]
    %v308 = vld [vmem:[#allocation2 + $0x30] sm:$0xff]
    %309 = vmatprep.subr.mxu0 0.0
    %310 = vmatpush1.xpose.msra.mxu0 0.0
    %311 = vmatprep.subr.mxu0 0.0
    %312 = vmatpush1.xpose.msra.mxu0 0.0
    %313 = vmatprep.subr.mxu0 0.0
    %314 = vmatpush1.xpose.msra.mxu0 0.0
    %315 = vmatprep.subr.mxu0 0.0
    %316 = vmatpush1.xpose.msra.mxu0 0.0
    %317 = vmatprep.subr.mxu0 0.0
    %318 = vmatpush1.xpose.msra.mxu0 0.0
    %319 = vmatprep.subr.mxu0 0.0
    %320 = vmatpush1.xpose.msra.mxu0 0.0
    %321 = vmatprep.subr.mxu0 0.0
    %322 = vmatpush1.xpose.msra.mxu0 0.0
    %323 = vmatprep.subr.mxu0 0.0
    %324 = vmatpush1.xpose.msra.mxu0 0.0
    %325 = vmatprep.subr.mxu0 0.0
    %326 = vmatpush1.xpose.msra.mxu0 0.0
    %327 = vmatprep.subr.mxu0 0.0
    %328 = vmatpush1.xpose.msra.mxu0 0.0
    %329 = vmatprep.subr.mxu0 0.0
    %330 = vmatpush1.xpose.msra.mxu0 0.0
    %331 = vmatprep.subr.mxu0 0.0
    %332 = vmatpush1.xpose.msra.mxu0 0.0
    %333 = vmatprep.subr.mxu0 0.0
    %334 = vmatpush1.xpose.msra.mxu0 %v308
    %335 = vmatprep.subr.mxu0 0.0
    %336 = vmatpush1.xpose.msra.mxu0 %v307
    %337 = vmatprep.subr.mxu0 0.0
    %338 = vmatpush1.xpose.msra.mxu0 %v306
    %339 = vmatprep.subr.mxu0 0.0
    %340 = vmatpush1.xpose.msra.mxu0 %v305
    %341 = vmatprep.subr.mxu0 0.0
    %342 = vmatpush2.xpose.msra.mxu0 0.0
    %343 = vmatprep.subr.mxu0 0.0
    %344 = vmatpush2.xpose.msra.mxu0 0.0
    %345 = vmatprep.subr.mxu0 0.0
    %346 = vmatpush2.xpose.msra.mxu0 0.0
    %347 = vmatprep.subr.mxu0 0.0
    %348 = vmatpush2.xpose.msra.mxu0 0.0
    %349 = vmatprep.subr.mxu0 0.0
    %350 = vmatpush2.xpose.msra.mxu0 0.0
    %351 = vmatprep.subr.mxu0 0.0
    %352 = vmatpush2.xpose.msra.mxu0 0.0
    %353 = vmatprep.subr.mxu0 0.0
    %354 = vmatpush2.xpose.msra.mxu0 0.0
    %355 = vmatprep.subr.mxu0 0.0
    %356 = vmatpush2.xpose.msra.mxu0 0.0
    %357 = vmatprep.subr.mxu0 0.0
    %358 = vmatpush2.xpose.msra.mxu0 0.0
    %359 = vmatprep.subr.mxu0 0.0
    %360 = vmatpush2.xpose.msra.mxu0 0.0
    %361 = vmatprep.subr.mxu0 0.0
    %362 = vmatpush2.xpose.msra.mxu0 0.0
    %363 = vmatprep.subr.mxu0 0.0
    %364 = vmatpush2.xpose.msra.mxu0 0.0
    %365 = vmatprep.subr.mxu0 0.0
    %366 = vmatpush2.xpose.msra.mxu0 0.0
    %367 = vmatprep.subr.mxu0 0.0
    %368 = vmatpush2.xpose.msra.mxu0 0.0
    %369 = vmatprep.subr.mxu0 0.0
    %370 = vmatpush2.xpose.msra.mxu0 0.0
    %371 = vmatprep.subr.mxu0 0.0
    %372 = vmatpush2.xpose.msra.mxu0 0.0
    %373 = vmatprep.mubr.f32.mxu0 0.0
    %374 = vmatmul.mubr.f32.gmra.mxu0 %v303
    %v375 = vpop.f32.mrf.mxu0
    %v376 = vadd.f32 0.0, %v375
    %v377 = vpop.f32.mrf.mxu0
    %378 = vmatprep.mubr.f32.mxu0 0.0
    %379 = vmatmul.mubr.f32.gmra.mxu0 %v304
    %v380 = vpop.f32.mrf.mxu0
    %v381 = vadd.f32 0.0, %v380
    %v382 = vpop.f32.mrf.mxu0
    %383 = vdwg.mxu0
    %v384 = vld [vmem:[#allocation2] sm:$0xff]
    %386 = vrot.lane.b32.xlu0 %v384, 64
    %v387 = vpop.permute.xlu0 %386
    %v389 = vadd.f32 %v376, %v387
    %v390 = vadd.f32 %v381, %v387
    %v391 = vmax.f32 %v389, 0.0
    %v392 = vmax.f32 %v390, 0.0
    %vm393 = vcmask 261120
    %v394 = vsel %vm393, %v391, 0.0
    %v395 = vrot.slane %v394, 4
    %v396 = vadd.f32 %v394, %v395
    %v397 = vrot.slane %v396, 2
    %v398 = vadd.f32 %v396, %v397
    %v399 = vrot.slane %v398, 1
    %v400 = vadd.f32 %v398, %v399
    %v401 = vsel %vm393, %v392, 0.0
    %v402 = vrot.slane %v401, 4
    %v403 = vadd.f32 %v401, %v402
    %v404 = vrot.slane %v403, 2
    %v405 = vadd.f32 %v403, %v404
    %v406 = vrot.slane %v405, 1
    %v407 = vadd.f32 %v405, %v406
    %vm410 = vcmask 1041409
    %v411 = vsel %vm410, %v407, %v400
    %v413 = vadd.f32 %v205, %v411
    %v414 = vld [vmem:[#allocation2 + $0x38] sm:$0xff]
    %v415 = vld [vmem:[#allocation2 + $0x40] sm:$0xff]
    %v416 = vld [vmem:[#allocation2 + $0x48] sm:$0xff]
    %v417 = vld [vmem:[#allocation2 + $0x50] sm:$0xff]
    %v418 = vld [vmem:[#allocation2 + $0x1] sm:$0x1]
    %v419 = vlaneseq
    %v420 = vshrl.u32 %v419, 7
    %v421 = vsub.s32 0, %v420
    %v422 = vrot.slane %v418, %v421
    %424 = vrot.lane.b32.xlu0 %v422, 32
    %v425 = vpop.permute.xlu0 %424
    %v428 = vsel %vm393, %v413, 0
    %430 = vmatprep.subr.mxu0 0.0
    %431 = vmatpush1.msra.mxu0 0.0
    %432 = vmatprep.subr.mxu0 0.0
    %433 = vmatpush1.msra.mxu0 0.0
    %434 = vmatprep.subr.mxu0 0.0
    %435 = vmatpush1.msra.mxu0 0.0
    %436 = vmatprep.subr.mxu0 0.0
    %437 = vmatpush1.msra.mxu0 0.0
    %438 = vmatprep.subr.mxu0 0.0
    %439 = vmatpush1.msra.mxu0 0.0
    %440 = vmatprep.subr.mxu0 0.0
    %441 = vmatpush1.msra.mxu0 0.0
    %442 = vmatprep.subr.mxu0 0.0
    %443 = vmatpush1.msra.mxu0 0.0
    %444 = vmatprep.subr.mxu0 0.0
    %445 = vmatpush1.msra.mxu0 0.0
    %446 = vmatprep.subr.mxu0 0.0
    %447 = vmatpush1.msra.mxu0 0.0
    %448 = vmatprep.subr.mxu0 0.0
    %449 = vmatpush1.msra.mxu0 0.0
    %450 = vmatprep.subr.mxu0 0.0
    %451 = vmatpush1.msra.mxu0 0.0
    %452 = vmatprep.subr.mxu0 0.0
    %453 = vmatpush1.msra.mxu0 0.0
    %454 = vmatprep.subr.mxu0 0.0
    %455 = vmatpush1.msra.mxu0 %v417
    %456 = vmatprep.subr.mxu0 0.0
    %457 = vmatpush1.msra.mxu0 %v416
    %458 = vmatprep.subr.mxu0 0.0
    %459 = vmatpush1.msra.mxu0 %v415
    %460 = vmatprep.subr.mxu0 0.0
    %461 = vmatpush1.msra.mxu0 %v414
    %462 = vmatprep.subr.mxu0 0.0
    %463 = vmatpush2.msra.mxu0 0.0
    %464 = vmatprep.subr.mxu0 0.0
    %465 = vmatpush2.msra.mxu0 0.0
    %466 = vmatprep.subr.mxu0 0.0
    %467 = vmatpush2.msra.mxu0 0.0
    %468 = vmatprep.subr.mxu0 0.0
    %469 = vmatpush2.msra.mxu0 0.0
    %470 = vmatprep.subr.mxu0 0.0
    %471 = vmatpush2.msra.mxu0 0.0
    %472 = vmatprep.subr.mxu0 0.0
    %473 = vmatpush2.msra.mxu0 0.0
    %474 = vmatprep.subr.mxu0 0.0
    %475 = vmatpush2.msra.mxu0 0.0
    %476 = vmatprep.subr.mxu0 0.0
    %477 = vmatpush2.msra.mxu0 0.0
    %478 = vmatprep.subr.mxu0 0.0
    %479 = vmatpush2.msra.mxu0 0.0
    %480 = vmatprep.subr.mxu0 0.0
    %481 = vmatpush2.msra.mxu0 0.0
    %482 = vmatprep.subr.mxu0 0.0
    %483 = vmatpush2.msra.mxu0 0.0
    %484 = vmatprep.subr.mxu0 0.0
    %485 = vmatpush2.msra.mxu0 0.0
    %486 = vmatprep.subr.mxu0 0.0
    %487 = vmatpush2.msra.mxu0 0.0
    %488 = vmatprep.subr.mxu0 0.0
    %489 = vmatpush2.msra.mxu0 0.0
    %490 = vmatprep.subr.mxu0 0.0
    %491 = vmatpush2.msra.mxu0 0.0
    %492 = vmatprep.subr.mxu0 0.0
    %493 = vmatpush2.msra.mxu0 0.0
    %494 = vmatprep.mubr.f32.mxu0 0.0
    %495 = vmatmul.mubr.f32.gmra.mxu0 %v428
    %v496 = vpop.f32.mrf.mxu0
    %v497 = vadd.f32 %v425, %v496
    %v498 = vpop.f32.mrf.mxu0
    %499 = vdwg.mxu0
    %504 = vrot.lane.b32.xlu0 %v414, 96
    %v505 = vpop.permute.xlu0 %504
    %506 = vrot.lane.b32.xlu0 %v415, 96
    %v507 = vpop.permute.xlu0 %506
    %508 = vrot.lane.b32.xlu0 %v416, 96
    %v509 = vpop.permute.xlu0 %508
    %510 = vrot.lane.b32.xlu0 %v417, 96
    %v511 = vpop.permute.xlu0 %510
    %v517 = vsel %vm393, %v391, 0
    %v520 = vsel %vm393, %v392, 0
    %522 = vmatprep.subr.mxu0 0.0
    %523 = vmatpush1.msra.mxu0 0.0
    %524 = vmatprep.subr.mxu0 0.0
    %525 = vmatpush1.msra.mxu0 0.0
    %526 = vmatprep.subr.mxu0 0.0
    %527 = vmatpush1.msra.mxu0 0.0
    %528 = vmatprep.subr.mxu0 0.0
    %529 = vmatpush1.msra.mxu0 0.0
    %530 = vmatprep.subr.mxu0 0.0
    %531 = vmatpush1.msra.mxu0 0.0
    %532 = vmatprep.subr.mxu0 0.0
    %533 = vmatpush1.msra.mxu0 0.0
    %534 = vmatprep.subr.mxu0 0.0
    %535 = vmatpush1.msra.mxu0 0.0
    %536 = vmatprep.subr.mxu0 0.0
    %537 = vmatpush1.msra.mxu0 0.0
    %538 = vmatprep.subr.mxu0 0.0
    %539 = vmatpush1.msra.mxu0 0.0
    %540 = vmatprep.subr.mxu0 0.0
    %541 = vmatpush1.msra.mxu0 0.0
    %542 = vmatprep.subr.mxu0 0.0
    %543 = vmatpush1.msra.mxu0 0.0
    %544 = vmatprep.subr.mxu0 0.0
    %545 = vmatpush1.msra.mxu0 0.0
    %546 = vmatprep.subr.mxu0 0.0
    %547 = vmatpush1.msra.mxu0 %v511
    %548 = vmatprep.subr.mxu0 0.0
    %549 = vmatpush1.msra.mxu0 %v509
    %550 = vmatprep.subr.mxu0 0.0
    %551 = vmatpush1.msra.mxu0 %v507
    %552 = vmatprep.subr.mxu0 0.0
    %553 = vmatpush1.msra.mxu0 %v505
    %554 = vmatprep.subr.mxu0 0.0
    %555 = vmatpush2.msra.mxu0 0.0
    %556 = vmatprep.subr.mxu0 0.0
    %557 = vmatpush2.msra.mxu0 0.0
    %558 = vmatprep.subr.mxu0 0.0
    %559 = vmatpush2.msra.mxu0 0.0
    %560 = vmatprep.subr.mxu0 0.0
    %561 = vmatpush2.msra.mxu0 0.0
    %562 = vmatprep.subr.mxu0 0.0
    %563 = vmatpush2.msra.mxu0 0.0
    %564 = vmatprep.subr.mxu0 0.0
    %565 = vmatpush2.msra.mxu0 0.0
    %566 = vmatprep.subr.mxu0 0.0
    %567 = vmatpush2.msra.mxu0 0.0
    %568 = vmatprep.subr.mxu0 0.0
    %569 = vmatpush2.msra.mxu0 0.0
    %570 = vmatprep.subr.mxu0 0.0
    %571 = vmatpush2.msra.mxu0 0.0
    %572 = vmatprep.subr.mxu0 0.0
    %573 = vmatpush2.msra.mxu0 0.0
    %574 = vmatprep.subr.mxu0 0.0
    %575 = vmatpush2.msra.mxu0 0.0
    %576 = vmatprep.subr.mxu0 0.0
    %577 = vmatpush2.msra.mxu0 0.0
    %578 = vmatprep.subr.mxu0 0.0
    %579 = vmatpush2.msra.mxu0 0.0
    %580 = vmatprep.subr.mxu0 0.0
    %581 = vmatpush2.msra.mxu0 0.0
    %582 = vmatprep.subr.mxu0 0.0
    %583 = vmatpush2.msra.mxu0 0.0
    %584 = vmatprep.subr.mxu0 0.0
    %585 = vmatpush2.msra.mxu0 0.0
    %586 = vmatprep.mubr.f32.mxu0 0.0
    %587 = vmatmul.mubr.f32.gmra.mxu0 %v517
    %v588 = vpop.f32.mrf.mxu0
    %v589 = vadd.f32 0.0, %v588
    %v590 = vpop.f32.mrf.mxu0
    %591 = vmatprep.mubr.f32.mxu0 0.0
    %592 = vmatmul.mubr.f32.gmra.mxu0 %v520
    %v593 = vpop.f32.mrf.mxu0
    %v594 = vadd.f32 0.0, %v593
    %v595 = vpop.f32.mrf.mxu0
    %596 = vdwg.mxu0
    %v598 = vsel %vm393, %v205, 0
    %600 = vmatprep.subr.mxu0 0.0
    %601 = vmatpush1.msra.mxu0 0.0
    %602 = vmatprep.subr.mxu0 0.0
    %603 = vmatpush1.msra.mxu0 0.0
    %604 = vmatprep.subr.mxu0 0.0
    %605 = vmatpush1.msra.mxu0 0.0
    %606 = vmatprep.subr.mxu0 0.0
    %607 = vmatpush1.msra.mxu0 0.0
    %608 = vmatprep.subr.mxu0 0.0
    %609 = vmatpush1.msra.mxu0 0.0
    %610 = vmatprep.subr.mxu0 0.0
    %611 = vmatpush1.msra.mxu0 0.0
    %612 = vmatprep.subr.mxu0 0.0
    %613 = vmatpush1.msra.mxu0 0.0
    %614 = vmatprep.subr.mxu0 0.0
    %615 = vmatpush1.msra.mxu0 0.0
    %616 = vmatprep.subr.mxu0 0.0
    %617 = vmatpush1.msra.mxu0 0.0
    %618 = vmatprep.subr.mxu0 0.0
    %619 = vmatpush1.msra.mxu0 0.0
    %620 = vmatprep.subr.mxu0 0.0
    %621 = vmatpush1.msra.mxu0 0.0
    %622 = vmatprep.subr.mxu0 0.0
    %623 = vmatpush1.msra.mxu0 0.0
    %624 = vmatprep.subr.mxu0 0.0
    %625 = vmatpush1.msra.mxu0 %v511
    %626 = vmatprep.subr.mxu0 0.0
    %627 = vmatpush1.msra.mxu0 %v509
    %628 = vmatprep.subr.mxu0 0.0
    %629 = vmatpush1.msra.mxu0 %v507
    %630 = vmatprep.subr.mxu0 0.0
    %631 = vmatpush1.msra.mxu0 %v505
    %632 = vmatprep.subr.mxu0 0.0
    %633 = vmatpush2.msra.mxu0 0.0
    %634 = vmatprep.subr.mxu0 0.0
    %635 = vmatpush2.msra.mxu0 0.0
    %636 = vmatprep.subr.mxu0 0.0
    %637 = vmatpush2.msra.mxu0 0.0
    %638 = vmatprep.subr.mxu0 0.0
    %639 = vmatpush2.msra.mxu0 0.0
    %640 = vmatprep.subr.mxu0 0.0
    %641 = vmatpush2.msra.mxu0 0.0
    %642 = vmatprep.subr.mxu0 0.0
    %643 = vmatpush2.msra.mxu0 0.0
    %644 = vmatprep.subr.mxu0 0.0
    %645 = vmatpush2.msra.mxu0 0.0
    %646 = vmatprep.subr.mxu0 0.0
    %647 = vmatpush2.msra.mxu0 0.0
    %648 = vmatprep.subr.mxu0 0.0
    %649 = vmatpush2.msra.mxu0 0.0
    %650 = vmatprep.subr.mxu0 0.0
    %651 = vmatpush2.msra.mxu0 0.0
    %652 = vmatprep.subr.mxu0 0.0
    %653 = vmatpush2.msra.mxu0 0.0
    %654 = vmatprep.subr.mxu0 0.0
    %655 = vmatpush2.msra.mxu0 0.0
    %656 = vmatprep.subr.mxu0 0.0
    %657 = vmatpush2.msra.mxu0 0.0
    %658 = vmatprep.subr.mxu0 0.0
    %659 = vmatpush2.msra.mxu0 0.0
    %660 = vmatprep.subr.mxu0 0.0
    %661 = vmatpush2.msra.mxu0 0.0
    %662 = vmatprep.subr.mxu0 0.0
    %663 = vmatpush2.msra.mxu0 0.0
    %664 = vmatprep.mubr.f32.mxu0 0.0
    %665 = vmatmul.mubr.f32.gmra.mxu0 %v598
    %v666 = vpop.f32.mrf.mxu0
    %v667 = vadd.f32 %v497, %v666
    %v668 = vpop.f32.mrf.mxu0
    %669 = vdwg.mxu0
    %v670 = vmax.f32 %v667, 0.0
    %v673 = vunpack.c.l.s4 1966171168
    %v674 = vunpack.c.0.s8 %v673
    %v675 = vlaneseq
    %v676 = vshrl.u32 %v675, 7
    %v677 = vsub.s32 %v674, %v676
    %v678 = vrot.slane %v497, %v677
    %v679 = vcombine.high %v678, %v678
    %v681 = vunpack.c.l.s4 1966171168
    %v682 = vunpack.c.0.s8 %v681
    %v683 = vlaneseq
    %v684 = vshrl.u32 %v683, 7
    %v685 = vsub.s32 %v682, %v684
    %v686 = vrot.slane %v678, %v685
    %v688 = vunpack.c.l.s4 1966171168
    %v689 = vunpack.c.0.s8 %v688
    %v690 = vlaneseq
    %v691 = vshrl.u32 %v690, 7
    %v692 = vsub.s32 %v689, %v691
    %v693 = vrot.slane %v679, %v692
    %v694 = vlaneseq
    %v695 = vshrl.u32 %v694, 7
    %v696 = vsub.s32 0, %v695
    %v697 = vrot.slane %v686, %v696
    %v698 = vlaneseq
    %v699 = vshrl.u32 %v698, 7
    %v700 = vsub.s32 0, %v699
    %v701 = vrot.slane %v693, %v700
    %v704 = vadd.f32 %v589, %v697
    %v705 = vadd.f32 %v594, %v701
    %v706 = vmax.f32 %v704, 0.0
    %v707 = vmax.f32 %v705, 0.0
    %v708 = vsel %vm393, %v706, 0.0
    %v709 = vrot.slane %v708, 4
    %v710 = vadd.f32 %v708, %v709
    %v711 = vrot.slane %v710, 2
    %v712 = vadd.f32 %v710, %v711
    %v713 = vrot.slane %v712, 1
    %v714 = vadd.f32 %v712, %v713
    %v715 = vsel %vm393, %v707, 0.0
    %v716 = vrot.slane %v715, 4
    %v717 = vadd.f32 %v715, %v716
    %v718 = vrot.slane %v717, 2
    %v719 = vadd.f32 %v717, %v718
    %v720 = vrot.slane %v719, 1
    %v721 = vadd.f32 %v719, %v720
    %v724 = vsel %vm410, %v721, %v714
    %v726 = vadd.f32 %v670, %v724
    %728 = vrot.lane.b32.xlu0 %v670, 32
    %v729 = vpop.permute.xlu0 %728
    %v731 = vsel %vm393, %v726, %v729
    %v732 = vld [vmem:[#allocation2 + $0x58] sm:$0xff]
    %v733 = vld [vmem:[#allocation2 + $0x60] sm:$0xff]
    %v734 = vld [vmem:[#allocation2 + $0x68] sm:$0xff]
    %v735 = vld [vmem:[#allocation2 + $0x70] sm:$0xff]
    %v736 = vld [vmem:[#allocation2 + $0x78] sm:$0xff]
    %v737 = vld [vmem:[#allocation2 + $0x80] sm:$0xff]
    %v738 = vld [vmem:[#allocation2 + $0x88] sm:$0xff]
    %v739 = vld [vmem:[#allocation2 + $0x90] sm:$0xff]
    %v740 = vld [vmem:[#allocation2 + $0x2] sm:$0x1]
    %v741 = vlaneseq
    %v742 = vshrl.u32 %v741, 7
    %v743 = vsub.s32 0, %v742
    %v744 = vrot.slane %v740, %v743
    %753 = vrot.lane.b32.xlu0 %v732, 96
    %v754 = vpop.permute.xlu0 %753
    %755 = vrot.lane.b32.xlu0 %v733, 96
    %v756 = vpop.permute.xlu0 %755
    %757 = vrot.lane.b32.xlu0 %v734, 96
    %v758 = vpop.permute.xlu0 %757
    %759 = vrot.lane.b32.xlu0 %v735, 96
    %v760 = vpop.permute.xlu0 %759
    %761 = vrot.lane.b32.xlu0 %v736, 96
    %v762 = vpop.permute.xlu0 %761
    %763 = vrot.lane.b32.xlu0 %v737, 96
    %v764 = vpop.permute.xlu0 %763
    %765 = vrot.lane.b32.xlu0 %v738, 96
    %v766 = vpop.permute.xlu0 %765
    %767 = vrot.lane.b32.xlu0 %v739, 96
    %v768 = vpop.permute.xlu0 %767
    %778 = vrot.lane.b32.xlu0 %v744, 32
    %v779 = vpop.permute.xlu0 %778
    %v782 = vsel %vm131, %v731, 0
    %784 = vmatprep.subr.mxu0 0.0
    %785 = vmatpush1.msra.mxu0 0.0
    %786 = vmatprep.subr.mxu0 0.0
    %787 = vmatpush1.msra.mxu0 0.0
    %788 = vmatprep.subr.mxu0 0.0
    %789 = vmatpush1.msra.mxu0 0.0
    %790 = vmatprep.subr.mxu0 0.0
    %791 = vmatpush1.msra.mxu0 0.0
    %792 = vmatprep.subr.mxu0 0.0
    %793 = vmatpush1.msra.mxu0 0.0
    %794 = vmatprep.subr.mxu0 0.0
    %795 = vmatpush1.msra.mxu0 0.0
    %796 = vmatprep.subr.mxu0 0.0
    %797 = vmatpush1.msra.mxu0 0.0
    %798 = vmatprep.subr.mxu0 0.0
    %799 = vmatpush1.msra.mxu0 0.0
    %800 = vmatprep.subr.mxu0 0.0
    %801 = vmatpush1.msra.mxu0 %v768
    %802 = vmatprep.subr.mxu0 0.0
    %803 = vmatpush1.msra.mxu0 %v766
    %804 = vmatprep.subr.mxu0 0.0
    %805 = vmatpush1.msra.mxu0 %v764
    %806 = vmatprep.subr.mxu0 0.0
    %807 = vmatpush1.msra.mxu0 %v762
    %808 = vmatprep.subr.mxu0 0.0
    %809 = vmatpush1.msra.mxu0 %v760
    %810 = vmatprep.subr.mxu0 0.0
    %811 = vmatpush1.msra.mxu0 %v758
    %812 = vmatprep.subr.mxu0 0.0
    %813 = vmatpush1.msra.mxu0 %v756
    %814 = vmatprep.subr.mxu0 0.0
    %815 = vmatpush1.msra.mxu0 %v754
    %816 = vmatprep.subr.mxu0 0.0
    %817 = vmatpush2.msra.mxu0 0.0
    %818 = vmatprep.subr.mxu0 0.0
    %819 = vmatpush2.msra.mxu0 0.0
    %820 = vmatprep.subr.mxu0 0.0
    %821 = vmatpush2.msra.mxu0 0.0
    %822 = vmatprep.subr.mxu0 0.0
    %823 = vmatpush2.msra.mxu0 0.0
    %824 = vmatprep.subr.mxu0 0.0
    %825 = vmatpush2.msra.mxu0 0.0
    %826 = vmatprep.subr.mxu0 0.0
    %827 = vmatpush2.msra.mxu0 0.0
    %828 = vmatprep.subr.mxu0 0.0
    %829 = vmatpush2.msra.mxu0 0.0
    %830 = vmatprep.subr.mxu0 0.0
    %831 = vmatpush2.msra.mxu0 0.0
    %832 = vmatprep.subr.mxu0 0.0
    %833 = vmatpush2.msra.mxu0 0.0
    %834 = vmatprep.subr.mxu0 0.0
    %835 = vmatpush2.msra.mxu0 0.0
    %836 = vmatprep.subr.mxu0 0.0
    %837 = vmatpush2.msra.mxu0 0.0
    %838 = vmatprep.subr.mxu0 0.0
    %839 = vmatpush2.msra.mxu0 0.0
    %840 = vmatprep.subr.mxu0 0.0
    %841 = vmatpush2.msra.mxu0 0.0
    %842 = vmatprep.subr.mxu0 0.0
    %843 = vmatpush2.msra.mxu0 0.0
    %844 = vmatprep.subr.mxu0 0.0
    %845 = vmatpush2.msra.mxu0 0.0
    %846 = vmatprep.subr.mxu0 0.0
    %847 = vmatpush2.msra.mxu0 0.0
    %848 = vmatprep.mubr.f32.mxu0 0.0
    %849 = vmatmul.mubr.f32.gmra.mxu0 %v782
    %v850 = vpop.f32.mrf.mxu0
    %v851 = vadd.f32 %v779, %v850
    %v852 = vpop.f32.mrf.mxu0
    %853 = vdwg.mxu0
    %v854 = vmax.f32 %v851, 0.0
    %v855 = vld [vmem:[#allocation2 + $0x38] sm:$0xff]
    %v856 = vld [vmem:[#allocation2 + $0x40] sm:$0xff]
    %v857 = vld [vmem:[#allocation2 + $0x48] sm:$0xff]
    %v858 = vld [vmem:[#allocation2 + $0x50] sm:$0xff]
    %v859 = vld [vmem:[#allocation2 + $0x7] sm:$0x1]
    %v860 = vlaneseq
    %v861 = vshrl.u32 %v860, 7
    %v862 = vsub.s32 0, %v861
    %v863 = vrot.slane %v859, %v862
    %868 = vrot.lane.b32.xlu0 %v855, 64
    %v869 = vpop.permute.xlu0 %868
    %870 = vrot.lane.b32.xlu0 %v856, 64
    %v871 = vpop.permute.xlu0 %870
    %872 = vrot.lane.b32.xlu0 %v857, 64
    %v873 = vpop.permute.xlu0 %872
    %874 = vrot.lane.b32.xlu0 %v858, 64
    %v875 = vpop.permute.xlu0 %874
    %v881 = vsel %vm393, %v854, 0
    %883 = vmatprep.subr.mxu0 0.0
    %884 = vmatpush1.msra.mxu0 0.0
    %885 = vmatprep.subr.mxu0 0.0
    %886 = vmatpush1.msra.mxu0 0.0
    %887 = vmatprep.subr.mxu0 0.0
    %888 = vmatpush1.msra.mxu0 0.0
    %889 = vmatprep.subr.mxu0 0.0
    %890 = vmatpush1.msra.mxu0 0.0
    %891 = vmatprep.subr.mxu0 0.0
    %892 = vmatpush1.msra.mxu0 0.0
    %893 = vmatprep.subr.mxu0 0.0
    %894 = vmatpush1.msra.mxu0 0.0
    %895 = vmatprep.subr.mxu0 0.0
    %896 = vmatpush1.msra.mxu0 0.0
    %897 = vmatprep.subr.mxu0 0.0
    %898 = vmatpush1.msra.mxu0 0.0
    %899 = vmatprep.subr.mxu0 0.0
    %900 = vmatpush1.msra.mxu0 0.0
    %901 = vmatprep.subr.mxu0 0.0
    %902 = vmatpush1.msra.mxu0 0.0
    %903 = vmatprep.subr.mxu0 0.0
    %904 = vmatpush1.msra.mxu0 0.0
    %905 = vmatprep.subr.mxu0 0.0
    %906 = vmatpush1.msra.mxu0 0.0
    %907 = vmatprep.subr.mxu0 0.0
    %908 = vmatpush1.msra.mxu0 %v875
    %909 = vmatprep.subr.mxu0 0.0
    %910 = vmatpush1.msra.mxu0 %v873
    %911 = vmatprep.subr.mxu0 0.0
    %912 = vmatpush1.msra.mxu0 %v871
    %913 = vmatprep.subr.mxu0 0.0
    %914 = vmatpush1.msra.mxu0 %v869
    %915 = vmatprep.subr.mxu0 0.0
    %916 = vmatpush2.msra.mxu0 0.0
    %917 = vmatprep.subr.mxu0 0.0
    %918 = vmatpush2.msra.mxu0 0.0
    %919 = vmatprep.subr.mxu0 0.0
    %920 = vmatpush2.msra.mxu0 0.0
    %921 = vmatprep.subr.mxu0 0.0
    %922 = vmatpush2.msra.mxu0 0.0
    %923 = vmatprep.subr.mxu0 0.0
    %924 = vmatpush2.msra.mxu0 0.0
    %925 = vmatprep.subr.mxu0 0.0
    %926 = vmatpush2.msra.mxu0 0.0
    %927 = vmatprep.subr.mxu0 0.0
    %928 = vmatpush2.msra.mxu0 0.0
    %929 = vmatprep.subr.mxu0 0.0
    %930 = vmatpush2.msra.mxu0 0.0
    %931 = vmatprep.subr.mxu0 0.0
    %932 = vmatpush2.msra.mxu0 0.0
    %933 = vmatprep.subr.mxu0 0.0
    %934 = vmatpush2.msra.mxu0 0.0
    %935 = vmatprep.subr.mxu0 0.0
    %936 = vmatpush2.msra.mxu0 0.0
    %937 = vmatprep.subr.mxu0 0.0
    %938 = vmatpush2.msra.mxu0 0.0
    %939 = vmatprep.subr.mxu0 0.0
    %940 = vmatpush2.msra.mxu0 0.0
    %941 = vmatprep.subr.mxu0 0.0
    %942 = vmatpush2.msra.mxu0 0.0
    %943 = vmatprep.subr.mxu0 0.0
    %944 = vmatpush2.msra.mxu0 0.0
    %945 = vmatprep.subr.mxu0 0.0
    %946 = vmatpush2.msra.mxu0 0.0
    %947 = vmatprep.mubr.f32.mxu0 0.0
    %948 = vmatmul.mubr.f32.gmra.mxu0 %v881
    %v949 = vpop.f32.mrf.mxu0
    %v950 = vadd.f32 %v863, %v949
    %v951 = vpop.f32.mrf.mxu0
    %952 = vdwg.mxu0
    %v953 = vmax.f32 %v950, 0.0
    %v954 = vld [vmem:[#allocation2 + $0x3] sm:$0x1]
    %v955 = vlaneseq
    %v956 = vshrl.u32 %v955, 7
    %v957 = vsub.s32 0, %v956
    %v958 = vrot.slane %v954, %v957
    %959 = vrot.lane.b32.xlu0 %v732, 64
    %v960 = vpop.permute.xlu0 %959
    %961 = vrot.lane.b32.xlu0 %v733, 64
    %v962 = vpop.permute.xlu0 %961
    %963 = vrot.lane.b32.xlu0 %v734, 64
    %v964 = vpop.permute.xlu0 %963
    %965 = vrot.lane.b32.xlu0 %v735, 64
    %v966 = vpop.permute.xlu0 %965
    %967 = vrot.lane.b32.xlu0 %v736, 64
    %v968 = vpop.permute.xlu0 %967
    %969 = vrot.lane.b32.xlu0 %v737, 64
    %v970 = vpop.permute.xlu0 %969
    %971 = vrot.lane.b32.xlu0 %v738, 64
    %v972 = vpop.permute.xlu0 %971
    %973 = vrot.lane.b32.xlu0 %v739, 64
    %v974 = vpop.permute.xlu0 %973
    %984 = vrot.lane.b32.xlu0 %v958, 32
    %v985 = vpop.permute.xlu0 %984
    %v988 = vsel %vm131, %v953, 0
    %990 = vmatprep.subr.mxu0 0.0
    %991 = vmatpush1.msra.mxu0 0.0
    %992 = vmatprep.subr.mxu0 0.0
    %993 = vmatpush1.msra.mxu0 0.0
    %994 = vmatprep.subr.mxu0 0.0
    %995 = vmatpush1.msra.mxu0 0.0
    %996 = vmatprep.subr.mxu0 0.0
    %997 = vmatpush1.msra.mxu0 0.0
    %998 = vmatprep.subr.mxu0 0.0
    %999 = vmatpush1.msra.mxu0 0.0
    %1000 = vmatprep.subr.mxu0 0.0
    %1001 = vmatpush1.msra.mxu0 0.0
    %1002 = vmatprep.subr.mxu0 0.0
    %1003 = vmatpush1.msra.mxu0 0.0
    %1004 = vmatprep.subr.mxu0 0.0
    %1005 = vmatpush1.msra.mxu0 0.0
    %1006 = vmatprep.subr.mxu0 0.0
    %1007 = vmatpush1.msra.mxu0 %v974
    %1008 = vmatprep.subr.mxu0 0.0
    %1009 = vmatpush1.msra.mxu0 %v972
    %1010 = vmatprep.subr.mxu0 0.0
    %1011 = vmatpush1.msra.mxu0 %v970
    %1012 = vmatprep.subr.mxu0 0.0
    %1013 = vmatpush1.msra.mxu0 %v968
    %1014 = vmatprep.subr.mxu0 0.0
    %1015 = vmatpush1.msra.mxu0 %v966
    %1016 = vmatprep.subr.mxu0 0.0
    %1017 = vmatpush1.msra.mxu0 %v964
    %1018 = vmatprep.subr.mxu0 0.0
    %1019 = vmatpush1.msra.mxu0 %v962
    %1020 = vmatprep.subr.mxu0 0.0
    %1021 = vmatpush1.msra.mxu0 %v960
    %1022 = vmatprep.subr.mxu0 0.0
    %1023 = vmatpush2.msra.mxu0 0.0
    %1024 = vmatprep.subr.mxu0 0.0
    %1025 = vmatpush2.msra.mxu0 0.0
    %1026 = vmatprep.subr.mxu0 0.0
    %1027 = vmatpush2.msra.mxu0 0.0
    %1028 = vmatprep.subr.mxu0 0.0
    %1029 = vmatpush2.msra.mxu0 0.0
    %1030 = vmatprep.subr.mxu0 0.0
    %1031 = vmatpush2.msra.mxu0 0.0
    %1032 = vmatprep.subr.mxu0 0.0
    %1033 = vmatpush2.msra.mxu0 0.0
    %1034 = vmatprep.subr.mxu0 0.0
    %1035 = vmatpush2.msra.mxu0 0.0
    %1036 = vmatprep.subr.mxu0 0.0
    %1037 = vmatpush2.msra.mxu0 0.0
    %1038 = vmatprep.subr.mxu0 0.0
    %1039 = vmatpush2.msra.mxu0 0.0
    %1040 = vmatprep.subr.mxu0 0.0
    %1041 = vmatpush2.msra.mxu0 0.0
    %1042 = vmatprep.subr.mxu0 0.0
    %1043 = vmatpush2.msra.mxu0 0.0
    %1044 = vmatprep.subr.mxu0 0.0
    %1045 = vmatpush2.msra.mxu0 0.0
    %1046 = vmatprep.subr.mxu0 0.0
    %1047 = vmatpush2.msra.mxu0 0.0
    %1048 = vmatprep.subr.mxu0 0.0
    %1049 = vmatpush2.msra.mxu0 0.0
    %1050 = vmatprep.subr.mxu0 0.0
    %1051 = vmatpush2.msra.mxu0 0.0
    %1052 = vmatprep.subr.mxu0 0.0
    %1053 = vmatpush2.msra.mxu0 0.0
    %1054 = vmatprep.mubr.f32.mxu0 0.0
    %1055 = vmatmul.mubr.f32.gmra.mxu0 %v988
    %v1056 = vpop.f32.mrf.mxu0
    %v1057 = vadd.f32 %v985, %v1056
    %v1058 = vpop.f32.mrf.mxu0
    %1059 = vdwg.mxu0
    %v1060 = vmax.f32 %v1057, 0.0
    %v1061 = vld [vmem:[#allocation2 + $0x4] sm:$0x1]
    %v1062 = vlaneseq
    %v1063 = vshrl.u32 %v1062, 7
    %v1064 = vsub.s32 0, %v1063
    %v1065 = vrot.slane %v1061, %v1064
    %1067 = vrot.lane.b32.xlu0 %v1065, 32
    %v1068 = vpop.permute.xlu0 %1067
    %v1070 = vmul.f32 %v1060, %v1068
    %vm1071 = vcmask 254976
    %v1072 = vsel %vm1071, %v1070, 0.0
    %1073 = vadd.xlane.f32.xlu0 %v1072
    %v1074 = vpop.xlane.xlu0 %1073
    %v1075 = vld [vmem:[#allocation2 + $0x5] sm:$0x1]
    %v1076 = vlaneseq
    %v1077 = vshrl.u32 %v1076, 7
    %v1078 = vsub.s32 0, %v1077
    %v1079 = vrot.slane %v1075, %v1078
    %v1080 = vadd.f32 %v1074, %v1079
    %1082 = vrot.lane.b32.xlu0 %v1080, 32
    %v1083 = vpop.permute.xlu0 %1082
    %vm1085 = vcmask 1024
    %1086 = vst.msk [vmem:[%s3] sm:$0x3] %vm1085, %v1083
    // Predicated region
    $region18: #{value_network_forward.1} parent=1 // pred_check
      _
    $region19: #{value_network_forward.1} parent=1 // pred_check_branch
      %1088 = sbr.rel (0) target = $region21
    $region20: #{value_network_forward.1} parent=1 // pred_region
      _
    $region21: #{value_network_forward.1} parent=1 // pred_fallthru
      _
    // Predicated region
    $region22: #{value_network_forward.1} parent=1 // pred_check
      _
    $region23: #{value_network_forward.1} parent=1 // pred_check_branch
      %1090 = sbr.rel (0) target = $region25
    $region24: #{value_network_forward.1} parent=1 // pred_region
      _
    $region25: #{value_network_forward.1} parent=1 // pred_fallthru
      _
    %1091 = vsyncpa [#allocation3], 1

</llo_original>
